<compile_context>
chip_gen: v5e
topology: v5e:2x2
jax: 0.10.0
libtpu: 0.0.40
codegen_flags: <defaults>
</compile_context>

<pallas_src>
import jax
import jax.numpy as jnp
import numpy as np
from jax import lax
from jax.experimental import pallas as pl
from jax.experimental.pallas import tpu as pltpu

SMOOTH = 1.0          # BinaryDiceLoss smooth
IGNORE_INDEX = -1     # DiceLoss_t ignore_index
_CHUNK = 1024         # inner compute sub-chunk (lanes, multiple of 128)


def _default_block_bytes():
    """Per-generation target size (bytes) of one logits block."""
    try:
        kind = jax.devices()[0].device_kind.lower()
    except Exception:
        kind = ""
    if "v5" in kind:
        return 2 << 20
    if "v7" in kind:
        return 8 << 20
    return 4 << 20        # v6e default (also a safe generic choice)


def _make_dice_kernel(C, ts, chunk, S, smooth, ignore_index):
    """Build the kernel closure over the static shape parameters.

    Grid = (N, n_spatial_tiles); one step == one (sample, spatial-tile).
      x_ref  : (C, ts)   logits tile (native dtype; cast to f32 in-kernel)
      t_ref  : (1, ts)   integer labels tile
      o_ref  : (1, 1)    per-sample summed-over-classes dice loss
      num_acc: (C, chunk) f32 lane-wide running sum of p * onehot * valid
      den_acc: (C, chunk) f32 lane-wide running sum of (p^2 + onehot) * valid
    """
    n_chunks = ts // chunk

    def kernel(x_ref, t_ref, o_ref, num_acc, den_acc):
        s = pl.program_id(1)
        n_s = pl.num_programs(1)

        @pl.when(s == 0)
        def _init():
            num_acc[...] = jnp.zeros_like(num_acc)
            den_acc[...] = jnp.zeros_like(den_acc)

        def body(c, carry):
            off = pl.multiple_of(c * chunk, chunk)
            x = x_ref[:, pl.ds(off, chunk)].astype(jnp.float32)        # (C, chunk)
            t = t_ref[:, pl.ds(off, chunk)]                            # (1, chunk) int

            # global column index of each lane; columns >= S are tail garbage
            col = s * ts + off + lax.broadcasted_iota(jnp.int32, (1, chunk), 1)
            in_bounds = col < S                                        # (1, chunk) bool

            valid = jnp.logical_and(t != ignore_index,
                                    in_bounds).astype(jnp.float32)     # (1, chunk)
            # zero undefined tail lanes BEFORE exp (NaN * 0 == NaN otherwise)
            x = jnp.where(in_bounds, x, 0.0)
            tclamp = jnp.maximum(t, 0).astype(jnp.int32)               # clamp_min(target, 0)

            # numerically stable softmax over the channel (sublane) axis;
            # one reciprocal + broadcast multiply instead of C divides.
            m = jnp.max(x, axis=0, keepdims=True)
            e = jnp.exp(x - m)
            r = 1.0 / jnp.sum(e, axis=0, keepdims=True)                # exact (1e-5 rtol)
            p = e * r                                                  # (C, chunk)

            # onehot * valid in a single select (onehot^2 == onehot)
            cls_idx = lax.broadcasted_iota(jnp.int32, (C, chunk), 0)
            ov = jnp.where(cls_idx == tclamp, valid, 0.0)              # (C, chunk)

            # lane-wide VPU accumulation; cross-lane reduce deferred to finalize
            num_acc[...] += p * ov
            den_acc[...] += p * (p * valid) + ov
            return carry

        lax.fori_loop(0, n_chunks, body, 0, unroll=(n_chunks <= 8))

        @pl.when(s == n_s - 1)
        def _fin():
            num = 2.0 * jnp.sum(num_acc[...], axis=1, keepdims=True) + smooth   # (C, 1)
            den = jnp.sum(den_acc[...], axis=1, keepdims=True) + smooth         # (C, 1)
            loss_c = 1.0 - num / den                                             # (C, 1)
            o_ref[...] = jnp.sum(loss_c, axis=0, keepdims=True)                  # (1, 1)

    return kernel


def dice_loss_t(logits_nchw, target_nhw, *, target_block_bytes=None):
    """DiceLoss_t.forward(output, target) with aux=False, weight=None."""
    N, C, H, W = logits_nchw.shape
    S = H * W

    x = logits_nchw.reshape(N, C, S)                    # native dtype, no copy
    t = target_nhw.reshape(N, 1, S)
    if not jnp.issubdtype(t.dtype, jnp.integer):
        t = t.astype(jnp.int32)

    # Only the tiny-spatial corner case (S < 128) is padded; large inputs are
    # never padded — the tail of the last block is masked in-kernel instead.
    if S < 128:
        x = jnp.pad(x, ((0, 0), (0, 0), (0, 128 - S)))
        t = jnp.pad(t, ((0, 0), (0, 0), (0, 128 - S)),
                    constant_values=IGNORE_INDEX)
    S_arr = x.shape[-1]

    if target_block_bytes is None:
        target_block_bytes = _default_block_bytes()
    itemsize = jnp.dtype(x.dtype).itemsize

    # chunk: inner compute sub-tile (multiple of 128, <= spatial extent)
    chunk = min(_CHUNK, (S_arr // 128) * 128)
    # ts: DMA block width, sized so C*ts*itemsize ~= target_block_bytes,
    # a multiple of chunk, and never exceeding the array extent.
    ts = max(chunk, (target_block_bytes // (C * itemsize)) // chunk * chunk)
    ts = min(ts, (S_arr // chunk) * chunk)
    n_st = -(-S_arr // ts)

    block_bytes = C * ts * itemsize + ts * jnp.dtype(t.dtype).itemsize
    vmem_limit = int(min(48 << 20, max(32 << 20, 3 * block_bytes + (8 << 20))))

    kernel = _make_dice_kernel(C, ts, chunk, S, SMOOTH, IGNORE_INDEX)

    per_sample = pl.pallas_call(
        kernel,
        out_shape=jax.ShapeDtypeStruct((N, 1, 1), jnp.float32),
        grid_spec=pltpu.PrefetchScalarGridSpec(
            num_scalar_prefetch=0,
            grid=(N, n_st),
            in_specs=[
                pl.BlockSpec((pl.Squeezed(), C, ts), lambda n, s: (n, 0, s)),
                pl.BlockSpec((pl.Squeezed(), 1, ts), lambda n, s: (n, 0, s)),
            ],
            out_specs=pl.BlockSpec((pl.Squeezed(), 1, 1), lambda n, s: (n, 0, 0)),
            scratch_shapes=[
                pltpu.VMEM((C, chunk), jnp.float32),   # num partials (lane-wide)
                pltpu.VMEM((C, chunk), jnp.float32),   # den partials (lane-wide)
            ],
        ),
        compiler_params=pltpu.CompilerParams(
            # batch axis shards across TensorCores; spatial axis is the reduction
            # carried in scratch, so it must stay "arbitrary".
            dimension_semantics=("parallel", "arbitrary"),
            vmem_limit_bytes=vmem_limit,
        ),
    )(x, t)

    # total = sum_c mean_n (1 - num/den) / C  ==  sum_n per_sample_n / (N * C)
    return jnp.sum(per_sample) / jnp.float32(N * C)


def _dice_loss_t_ref(logits_nchw, target_nhw):
    """Pure-JAX reference mirroring the PyTorch code (sanity check)."""
    N, C, H, W = logits_nchw.shape
    p = jax.nn.softmax(logits_nchw.astype(jnp.float32), axis=1).reshape(N, C, -1)
    valid = (target_nhw != IGNORE_INDEX).reshape(N, -1).astype(jnp.float32)
    tc = jnp.maximum(target_nhw, 0).reshape(N, -1)
    onehot = jax.nn.one_hot(tc, C, dtype=jnp.float32)   # (N, S, C)
    total = jnp.float32(0.0)
    for i in range(C):
        num = jnp.sum(p[:, i] * onehot[..., i] * valid, axis=1) * 2.0 + SMOOTH
        den = jnp.sum((p[:, i] ** 2 + onehot[..., i] ** 2) * valid, axis=1) + SMOOTH
        total = total + jnp.mean(1.0 - num / den)
    return total / C


if __name__ == "__main__":
    key = jax.random.PRNGKey(0)
    k1, k2, k3, k4 = jax.random.split(key, 4)

    # Case 1: small NCHW, spatial a multiple of 128 (single spatial tile)
    N, C, H, W = 2, 4, 16, 16
    logits = jax.random.normal(k1, (N, C, H, W), dtype=jnp.float32)
    target = jax.random.randint(k2, (N, H, W), -1, C, dtype=jnp.int32)  # -1 hits ignore_index
    loss = jax.block_until_ready(dice_loss_t(logits, target))
    loss_ref = jax.block_until_ready(_dice_loss_t_ref(logits, target))
    np.testing.assert_allclose(np.asarray(loss), np.asarray(loss_ref),
                               rtol=1e-5, atol=1e-6)

    # Case 2: odd spatial size (exercises the tail-masking / tiny-pad path)
    N2, C2, H2, W2 = 2, 3, 7, 9
    logits2 = jax.random.normal(k3, (N2, C2, H2, W2), dtype=jnp.float32)
    target2 = jax.random.randint(k4, (N2, H2, W2), -1, C2, dtype=jnp.int32)
    loss2 = jax.block_until_ready(dice_loss_t(logits2, target2))
    loss2_ref = jax.block_until_ready(_dice_loss_t_ref(logits2, target2))
    np.testing.assert_allclose(np.asarray(loss2), np.asarray(loss2_ref),
                               rtol=1e-5, atol=1e-6)

    print("KERNEL_OK")
</pallas_src>

<mosaic_0001>
module attributes {stable_mosaic.version = 11 : i64} {
  func.func @kernel(%arg0: i32, %arg1: i32, %arg2: memref<1x4x256xf32, #tpu.memory_space<vmem>>, %arg3: memref<1x1x256xi32, #tpu.memory_space<vmem>>, %arg4: memref<1x1x1xf32, #tpu.memory_space<vmem>>, %arg5: memref<4x256xf32, #tpu.memory_space<vmem>>, %arg6: memref<4x256xf32, #tpu.memory_space<vmem>>) attributes {dimension_semantics = [#tpu.dimension_semantics<parallel>, #tpu.dimension_semantics<arbitrary>], iteration_bounds = array<i64: 2, 1>, scalar_prefetch = 0 : i64, scratch_operands = 2 : i64, tpu.core_type = #tpu.core_type<tc>, window_params = [{transform_indices = @transform_0, window_bounds = array<i64: 1, 4, 256>}, {transform_indices = @transform_1, window_bounds = array<i64: 1, 1, 256>}, {transform_indices = @transform_2, window_bounds = array<i64: 1, 1, 1>}]} {
    %c0_i32 = arith.constant 0 : i32
    %0 = arith.cmpi eq, %arg1, %c0_i32 : i32
    %1 = arith.extui %0 : i1 to i32
    %c0_i32_0 = arith.constant 0 : i32
    %2 = arith.cmpi ne, %1, %c0_i32_0 : i32
    scf.if %2 {
      %cst_22 = arith.constant 0.000000e+00 : f32
      %61 = vector.broadcast %cst_22 : f32 to vector<4x256xf32>
      %c0_23 = arith.constant 0 : index
      %c0_24 = arith.constant 0 : index
      %62 = vector.load %arg5[%c0_23, %c0_24] : memref<4x256xf32, #tpu.memory_space<vmem>>, vector<4x256xf32>
      tpu.vector_store %arg5[%c0_23, %c0_24], %61 {strides = array<i32>} : memref<4x256xf32, #tpu.memory_space<vmem>>, vector<4x256xf32>,
      %cst_25 = arith.constant 0.000000e+00 : f32
      %63 = vector.broadcast %cst_25 : f32 to vector<4x256xf32>
      %c0_26 = arith.constant 0 : index
      %c0_27 = arith.constant 0 : index
      %64 = vector.load %arg6[%c0_26, %c0_27] : memref<4x256xf32, #tpu.memory_space<vmem>>, vector<4x256xf32>
      tpu.vector_store %arg6[%c0_26, %c0_27], %63 {strides = array<i32>} : memref<4x256xf32, #tpu.memory_space<vmem>>, vector<4x256xf32>,
    } else {
    }
    %c0_i32_1 = arith.constant 0 : i32
    %c256_i32 = arith.constant 256 : i32
    %3 = arith.muli %c0_i32_1, %c256_i32 : i32
    %4 = tpu.assume_multiple %3, 256 : i32
    %c0 = arith.constant 0 : index
    %c0_2 = arith.constant 0 : index
    %5 = arith.index_cast %4 : i32 to index
    %6 = vector.load %arg2[%c0, %c0_2, %5] : memref<1x4x256xf32, #tpu.memory_space<vmem>>, vector<1x4x256xf32>
    %7 = vector.shape_cast %6 : vector<1x4x256xf32> to vector<4x256xf32>
    %c0_3 = arith.constant 0 : index
    %c0_4 = arith.constant 0 : index
    %8 = arith.index_cast %4 : i32 to index
    %9 = vector.load %arg3[%c0_3, %c0_4, %8] : memref<1x1x256xi32, #tpu.memory_space<vmem>>, vector<1x1x256xi32>
    %10 = vector.shape_cast %9 : vector<1x1x256xi32> to vector<1x256xi32>
    %c256_i32_5 = arith.constant 256 : i32
    %11 = arith.muli %arg1, %c256_i32_5 : i32
    %12 = arith.addi %11, %4 : i32
    %13 = tpu.iota {dimensions = array<i32: 1>} : vector<1x256xi32>
    %14 = vector.broadcast %12 : i32 to vector<1x256xi32>
    %15 = arith.addi %14, %13 : vector<1x256xi32>
    %c256_i32_6 = arith.constant 256 : i32
    %16 = vector.broadcast %c256_i32_6 : i32 to vector<1x256xi32>
    %17 = arith.cmpi slt, %15, %16 : vector<1x256xi32>
    %c-1_i32 = arith.constant -1 : i32
    %18 = vector.broadcast %c-1_i32 : i32 to vector<1x256xi32>
    %19 = arith.cmpi ne, %10, %18 : vector<1x256xi32>
    %20 = arith.andi %19, %17 : vector<1x256xi1>
    %21 = arith.extui %20 : vector<1x256xi1> to vector<1x256xi32>
    %22 = arith.sitofp %21 : vector<1x256xi32> to vector<1x256xf32>
    %cst = arith.constant 0.000000e+00 : f32
    %23 = vector.shape_cast %17 : vector<1x256xi1> to vector<1x256xi1>
    %24 = vector.broadcast %23 : vector<1x256xi1> to vector<4x256xi1>
    %25 = vector.broadcast %cst : f32 to vector<4x256xf32>
    %26 = arith.select %24, %7, %25 : vector<4x256xi1>, vector<4x256xf32>
    %c0_i32_7 = arith.constant 0 : i32
    %27 = vector.broadcast %c0_i32_7 : i32 to vector<1x256xi32>
    %28 = arith.maxsi %10, %27 : vector<1x256xi32>
    %cst_8 = arith.constant dense<0xFF800000> : vector<256xf32>
    %29 = vector.multi_reduction <maximumf>, %26, %cst_8 [0] : vector<4x256xf32> to vector<256xf32>
    %30 = vector.shape_cast %29 : vector<256xf32> to vector<1x256xf32>
    %31 = vector.broadcast %30 : vector<1x256xf32> to vector<4x256xf32>
    %32 = arith.subf %26, %31 : vector<4x256xf32>
    %33 = math.exp %32 : vector<4x256xf32>
    %cst_9 = arith.constant dense<0.000000e+00> : vector<256xf32>
    %34 = vector.multi_reduction <add>, %33, %cst_9 [0] : vector<4x256xf32> to vector<256xf32>
    %35 = vector.shape_cast %34 : vector<256xf32> to vector<1x256xf32>
    %cst_10 = arith.constant 1.000000e+00 : f32
    %36 = vector.broadcast %cst_10 : f32 to vector<1x256xf32>
    %37 = arith.divf %36, %35 : vector<1x256xf32>
    %38 = vector.broadcast %37 : vector<1x256xf32> to vector<4x256xf32>
    %39 = arith.mulf %33, %38 : vector<4x256xf32>
    %40 = tpu.iota {dimensions = array<i32: 0>} : vector<4x256xi32>
    %41 = vector.broadcast %28 : vector<1x256xi32> to vector<4x256xi32>
    %42 = arith.cmpi eq, %40, %41 : vector<4x256xi32>
    %cst_11 = arith.constant 0.000000e+00 : f32
    %43 = vector.shape_cast %22 : vector<1x256xf32> to vector<1x256xf32>
    %44 = vector.broadcast %43 : vector<1x256xf32> to vector<4x256xf32>
    %45 = vector.broadcast %cst_11 : f32 to vector<4x256xf32>
    %46 = arith.select %42, %44, %45 : vector<4x256xi1>, vector<4x256xf32>
    %c0_12 = arith.constant 0 : index
    %c0_13 = arith.constant 0 : index
    %47 = vector.load %arg5[%c0_12, %c0_13] : memref<4x256xf32, #tpu.memory_space<vmem>>, vector<4x256xf32>
    %48 = arith.mulf %39, %46 : vector<4x256xf32>
    %49 = arith.addf %47, %48 : vector<4x256xf32>
    %c0_14 = arith.constant 0 : index
    %c0_15 = arith.constant 0 : index
    %50 = vector.load %arg5[%c0_14, %c0_15] : memref<4x256xf32, #tpu.memory_space<vmem>>, vector<4x256xf32>
    tpu.vector_store %arg5[%c0_14, %c0_15], %49 {strides = array<i32>} : memref<4x256xf32, #tpu.memory_space<vmem>>, vector<4x256xf32>,
    %c0_16 = arith.constant 0 : index
    %c0_17 = arith.constant 0 : index
    %51 = vector.load %arg6[%c0_16, %c0_17] : memref<4x256xf32, #tpu.memory_space<vmem>>, vector<4x256xf32>
    %52 = vector.broadcast %22 : vector<1x256xf32> to vector<4x256xf32>
    %53 = arith.mulf %39, %52 : vector<4x256xf32>
    %54 = arith.mulf %39, %53 : vector<4x256xf32>
    %55 = arith.addf %54, %46 : vector<4x256xf32>
    %56 = arith.addf %51, %55 : vector<4x256xf32>
    %c0_18 = arith.constant 0 : index
    %c0_19 = arith.constant 0 : index
    %57 = vector.load %arg6[%c0_18, %c0_19] : memref<4x256xf32, #tpu.memory_space<vmem>>, vector<4x256xf32>
    tpu.vector_store %arg6[%c0_18, %c0_19], %56 {strides = array<i32>} : memref<4x256xf32, #tpu.memory_space<vmem>>, vector<4x256xf32>,
    %c1_i32 = arith.constant 1 : i32
    %c0_i32_20 = arith.constant 0 : i32
    %58 = arith.cmpi eq, %arg1, %c0_i32_20 : i32
    %59 = arith.extui %58 : i1 to i32
    %c0_i32_21 = arith.constant 0 : i32
    %60 = arith.cmpi ne, %59, %c0_i32_21 : i32
    scf.if %60 {
      %c0_22 = arith.constant 0 : index
      %c0_23 = arith.constant 0 : index
      %61 = vector.load %arg5[%c0_22, %c0_23] : memref<4x256xf32, #tpu.memory_space<vmem>>, vector<4x256xf32>
      %cst_24 = arith.constant dense<0.000000e+00> : vector<4xf32>
      %62 = vector.multi_reduction <add>, %61, %cst_24 [1] : vector<4x256xf32> to vector<4xf32>
      %63 = vector.shape_cast %62 : vector<4xf32> to vector<4x1xf32>
      %cst_25 = arith.constant 2.000000e+00 : f32
      %64 = vector.broadcast %cst_25 : f32 to vector<4x1xf32>
      %65 = arith.mulf %64, %63 : vector<4x1xf32>
      %cst_26 = arith.constant 1.000000e+00 : f32
      %66 = vector.broadcast %cst_26 : f32 to vector<4x1xf32>
      %67 = arith.addf %65, %66 : vector<4x1xf32>
      %c0_27 = arith.constant 0 : index
      %c0_28 = arith.constant 0 : index
      %68 = vector.load %arg6[%c0_27, %c0_28] : memref<4x256xf32, #tpu.memory_space<vmem>>, vector<4x256xf32>
      %cst_29 = arith.constant dense<0.000000e+00> : vector<4xf32>
      %69 = vector.multi_reduction <add>, %68, %cst_29 [1] : vector<4x256xf32> to vector<4xf32>
      %70 = vector.shape_cast %69 : vector<4xf32> to vector<4x1xf32>
      %cst_30 = arith.constant 1.000000e+00 : f32
      %71 = vector.broadcast %cst_30 : f32 to vector<4x1xf32>
      %72 = arith.addf %70, %71 : vector<4x1xf32>
      %73 = arith.divf %67, %72 : vector<4x1xf32>
      %cst_31 = arith.constant 1.000000e+00 : f32
      %74 = vector.broadcast %cst_31 : f32 to vector<4x1xf32>
      %75 = arith.subf %74, %73 : vector<4x1xf32>
      %cst_32 = arith.constant dense<0.000000e+00> : vector<1xf32>
      %76 = vector.multi_reduction <add>, %75, %cst_32 [0] : vector<4x1xf32> to vector<1xf32>
      %77 = vector.shape_cast %76 : vector<1xf32> to vector<1x1xf32>
      %c0_33 = arith.constant 0 : index
      %c0_34 = arith.constant 0 : index
      %c0_35 = arith.constant 0 : index
      %78 = vector.load %arg4[%c0_33, %c0_34, %c0_35] : memref<1x1x1xf32, #tpu.memory_space<vmem>>, vector<1x1x1xf32>
      %79 = vector.shape_cast %78 : vector<1x1x1xf32> to vector<1x1xf32>
      %80 = vector.shape_cast %77 : vector<1x1xf32> to vector<1x1x1xf32>
      tpu.vector_store %arg4[%c0_33, %c0_34, %c0_35], %80 {strides = array<i32>} : memref<1x1x1xf32, #tpu.memory_space<vmem>>, vector<1x1x1xf32>,
    } else {
    }
    return
  }
  func.func @transform_0(%arg0: i32, %arg1: i32) -> (i32, i32, i32) {
    %c0_i32 = arith.constant 0 : i32
    %c0_i32_0 = arith.constant 0 : i32
    return %arg0, %c0_i32, %arg1 : i32, i32, i32
  }
  func.func @transform_1(%arg0: i32, %arg1: i32) -> (i32, i32, i32) {
    %c0_i32 = arith.constant 0 : i32
    %c0_i32_0 = arith.constant 0 : i32
    return %arg0, %c0_i32, %arg1 : i32, i32, i32
  }
  func.func @transform_2(%arg0: i32, %arg1: i32) -> (i32, i32, i32) {
    %c0_i32 = arith.constant 0 : i32
    %c0_i32_0 = arith.constant 0 : i32
    %c0_i32_1 = arith.constant 0 : i32
    return %arg0, %c0_i32, %c0_i32_0 : i32, i32, i32
  }
}

</mosaic_0001>

<llo_original>
// kernel: tpu_custom_call.1
$region0: #{tpu_custom_call.1}
  #allocation0 [shape = 'u32[]', space=smem, size = 0x4, offset = 0x4, fixed_abs, tag = 'smem constant byte address 0x4 - core index']
  #allocation1 [shape = 'u32[72,128]{1,0:T(1,128)}', space=vmem, size = 0x9000, scoped, tag = 'internal scratch']
  #allocation2 [shape = 'f32[4,256]{1,0:T(4,128)}', space=vmem, size = 0x1000, scoped, tag = 'scratch operand']
  #allocation3 [shape = 'f32[4,256]{1,0:T(4,128)}', space=vmem, size = 0x1000, scoped, tag = 'scratch operand']
  %s0 = inlined_call_operand.hbm [shape: f32[2,4,256], index: 0, kind: input, shape index: {}]
  %s1 = inlined_call_operand.hbm [shape: s32[2,1,256], index: 1, kind: input, shape index: {}]
  %s2 = inlined_call_operand.vmem [shape: f32[2,1,1], index: 2, kind: output, shape index: {}]
  %s3 = sld [smem:[#allocation0]]
  $region57: #{tpu_custom_call.1} parent=0
    _
  %s5 = ssub.s32 1, %s3
  %s6 = scalar_select 0, %s5, %s3
  $region1: #{tpu_custom_call.1} parent=0
    #allocation4 [shape = 'u8[8192]{0}', space=vmem, size = 0x2000, scoped, tag = 'input window, operand 0']
    #allocation5 [shape = 's32[2]{0}', space=sflag, size = 0x8, scoped, tag = 'scoped memory for tpu_custom_call.1']
    #allocation6 [shape = 'u8[2048]{0}', space=vmem, size = 0x800, scoped, tag = 'input window, operand 1']
    #allocation7 [shape = 's32[2]{0}', space=sflag, size = 0x8, scoped, tag = 'scoped memory for tpu_custom_call.1']
    %7 = vsyncpa [#allocation5], 0
    %s8 = scalar_lea.sflag [#allocation5], 1
    %9 = vsyncpa %s8, 0
    %10 = vsyncpa [#allocation7], 0
    %s11 = scalar_lea.sflag [#allocation7], 1
    %12 = vsyncpa %s11, 0
    loop: start=0, step=1, limit=4
    $region2: #{tpu_custom_call.1} parent=1 // loop_pre_header
      _
    $region3: #{tpu_custom_call.1} parent=1 // loop_header
      %s14 = sphi 0, %s18
      %p15 = scmp.ge.s32.totalorder %s14, 4
      %s21 = sphi 0, %s33
      %s22 = sphi 0, %s29
      %s23 = sphi 0, %s21
      %s24 = sphi 0, %s22
      %s25 = sphi 0, %s23
      %s26 = sphi 0, %s24
      %s38 = sphi 0, %s40
      %s41 = sphi 0, %s38
      %s42 = sphi 0, %s41
      %s58 = sphi 0, %s42
      %s66 = sphi 0, %s68
      %s69 = sphi 0, %s66
      %s70 = sphi 0, %s69
      %s86 = sphi 0, %s70
      %s92 = sphi 0, %s94
      %s95 = sphi 0, %s92
      %s96 = sphi 0, %s95
      %s112 = sphi 0, %s96
    $region4: #{tpu_custom_call.1} parent=1 // loop_header_branch
      %17 = sbr.rel (%p15) target = $region8
    $region5: #{tpu_custom_call.1} parent=1 // loop_body
      %s19 = ssub.s32 %s14, 1
      %s20 = ssub.s32 %s14, 2
      %s27 = sadd.s32 1, %s22
      %p28 = scmp.ge.s32.totalorder %s27, 1
      %s29 = scalar_select %p28, 0, %s27
      %s30 = sadd.s32 1, %s21
      %s31 = scalar_select %p28, %s30, %s21
      %p32 = scmp.ge.s32.totalorder %s31, 2
      %s33 = scalar_select %p32, 0, %s31
      %s34 = ssub.s32 %s21, %s33
      %s35 = ssub.s32 %s22, %s29
      %s36 = sor.u32 %s34, %s35
      %p37 = scmp.eq.s32.totalorder %s36, 0
      %s39 = sadd.s32 %s38, 1
      %s40 = scalar_select %p37, %s38, %s39
      %p43 = pneg %p37
      %p44 = scmp.eq.s32.totalorder %s14, 1
      %p45 = por %p43, %p44
      %p46 = scmp.ne.s32.totalorder %s38, %s41
      %p47 = scmp.eq.s32.totalorder %s14, 0
      %p48 = por %p46, %p47
      %p49 = scmp.ne.s32.totalorder %s38, %s41
      %p50 = scmp.eq.s32.totalorder %s19, 1
      %p51 = por %p49, %p50
      %p52 = scmp.ne.s32.totalorder %s41, %s42
      %p53 = scmp.eq.s32.totalorder %s19, 0
      %p54 = por %p52, %p53
      %p55 = scmp.ne.s32.totalorder %s41, %s42
      %p56 = scmp.eq.s32.totalorder %s20, 1
      %p57 = por %p55, %p56
      %p59 = scmp.ne.s32.totalorder %s42, %s58
      %p60 = scmp.eq.s32.totalorder %s20, 0
      %p61 = por %p59, %p60
      %s62 = ssub.s32 %s21, %s33
      %s63 = ssub.s32 %s22, %s29
      %s64 = sor.u32 %s62, %s63
      %p65 = scmp.eq.s32.totalorder %s64, 0
      %s67 = sadd.s32 %s66, 1
      %s68 = scalar_select %p65, %s66, %s67
      %p71 = pneg %p65
      %p72 = scmp.eq.s32.totalorder %s14, 1
      %p73 = por %p71, %p72
      %p74 = scmp.ne.s32.totalorder %s66, %s69
      %p75 = scmp.eq.s32.totalorder %s14, 0
      %p76 = por %p74, %p75
      %p77 = scmp.ne.s32.totalorder %s66, %s69
      %p78 = scmp.eq.s32.totalorder %s19, 1
      %p79 = por %p77, %p78
      %p80 = scmp.ne.s32.totalorder %s69, %s70
      %p81 = scmp.eq.s32.totalorder %s19, 0
      %p82 = por %p80, %p81
      %p83 = scmp.ne.s32.totalorder %s69, %s70
      %p84 = scmp.eq.s32.totalorder %s20, 1
      %p85 = por %p83, %p84
      %p87 = scmp.ne.s32.totalorder %s70, %s86
      %p88 = scmp.eq.s32.totalorder %s20, 0
      %p89 = por %p87, %p88
      %s90 = ssub.s32 %s21, %s33
      %p91 = scmp.eq.s32.totalorder %s90, 0
      %s93 = sadd.s32 %s92, 1
      %s94 = scalar_select %p91, %s92, %s93
      %p97 = pneg %p91
      %p98 = scmp.eq.s32.totalorder %s14, 1
      %p99 = por %p97, %p98
      %p100 = scmp.ne.s32.totalorder %s92, %s95
      %p101 = scmp.eq.s32.totalorder %s14, 0
      %p102 = por %p100, %p101
      %p103 = scmp.ne.s32.totalorder %s92, %s95
      %p104 = scmp.eq.s32.totalorder %s19, 1
      %p105 = por %p103, %p104
      %p106 = scmp.ne.s32.totalorder %s95, %s96
      %p107 = scmp.eq.s32.totalorder %s19, 0
      %p108 = por %p106, %p107
      %p109 = scmp.ne.s32.totalorder %s95, %s96
      %p110 = scmp.eq.s32.totalorder %s20, 1
      %p111 = por %p109, %p110
      %p113 = scmp.ne.s32.totalorder %s96, %s112
      %p114 = scmp.eq.s32.totalorder %s20, 0
      %p115 = por %p113, %p114
      %p116 = scmp.le.s32.totalorder 1, %s14
      %p117 = scmp.lt.s32.totalorder %s14, 3
      %p118 = pnand %p116, %p117
      %p119 = pneg %p118
      // Predicated region
      $region9: #{tpu_custom_call.1} parent=5 // pred_check
        _
      $region10: #{tpu_custom_call.1} parent=5 // pred_check_branch
        %121 = sbr.rel (%p118) target = $region12
      $region11: #{tpu_custom_call.1} parent=5 // pred_region
        %s122 = ssub.s32 %s14, 1
      $region12: #{tpu_custom_call.1} parent=5 // pred_fallthru
        _
      %p123 = scmp.lt.s32.totalorder %s14, 2
      // Predicated region
      $region13: #{tpu_custom_call.1} parent=5 // pred_check
        %p124 = pneg %p123
      $region14: #{tpu_custom_call.1} parent=5 // pred_check_branch
        %126 = sbr.rel (%p124) target = $region16
      $region15: #{tpu_custom_call.1} parent=5 // pred_region
        // Predicated region
        $region17: #{tpu_custom_call.1} parent=15 // pred_check
          %p127 = pneg %p48
        $region18: #{tpu_custom_call.1} parent=15 // pred_check_branch
          %129 = sbr.rel (%p127) target = $region20
        $region19: #{tpu_custom_call.1} parent=15 // pred_region
          %s130 = sand.u32 %s38, 1
          %s131 = scalar_lea.sflag [#allocation5], %s130
          %s132 = sand.u32 %s38, 1
          %s133 = smul.addr %s132, 8
          %s134 = scalar_lea.vmem [#allocation4], %s133
          %s135 = smul.u32 2, %s22
          %137 = vsyncadd %s131, 0
          %s138 = smul.addr %s21, 2
          %s139 = sadd.s32 %s135, %s138
          %s140 = smul.addr %s139, 4
          %s141 = scalar_lea.hbm %s0, %s140
          %s143 = sshll.u32 %s141, 4
          %s144 = int_to_ptr.hbm [resolvable:$true] %s143
          %s145 = sshll.u32 %s134, 4
          %s146 = int_to_ptr.vmem [resolvable:$true] %s145
          %148 = dma.hbm_to_vmem [thread:$0]  %s144, 128, %s146, %s131
        $region20: #{tpu_custom_call.1} parent=15 // pred_fallthru
          _
        // Predicated region
        $region21: #{tpu_custom_call.1} parent=15 // pred_check
          %p149 = pneg %p76
        $region22: #{tpu_custom_call.1} parent=15 // pred_check_branch
          %151 = sbr.rel (%p149) target = $region24
        $region23: #{tpu_custom_call.1} parent=15 // pred_region
          %s152 = sand.u32 %s66, 1
          %s153 = scalar_lea.sflag [#allocation7], %s152
          %s154 = sand.u32 %s66, 1
          %s155 = smul.addr %s154, 2
          %s156 = scalar_lea.vmem [#allocation6], %s155
          %s157 = smul.u32 2, %s22
          %159 = vsyncadd %s153, 0
          %s160 = smul.addr %s21, 2
          %s161 = sadd.s32 %s157, %s160
          %s162 = scalar_lea.hbm %s1, %s161
          %s164 = sshll.u32 %s162, 4
          %s165 = int_to_ptr.hbm [resolvable:$true] %s164
          %s166 = sshll.u32 %s156, 4
          %s167 = int_to_ptr.vmem [resolvable:$true] %s166
          %169 = dma.hbm_to_vmem [thread:$0]  %s165, 32, %s167, %s153
        $region24: #{tpu_custom_call.1} parent=15 // pred_fallthru
          _
      $region16: #{tpu_custom_call.1} parent=5 // pred_fallthru
        _
      %p170 = scmp.le.s32.totalorder 1, %s14
      %p171 = scmp.lt.s32.totalorder %s14, 3
      %p172 = pnand %p170, %p171
      %p173 = pneg %p172
      // Predicated region
      $region25: #{tpu_custom_call.1} parent=5 // pred_check
        _
      $region26: #{tpu_custom_call.1} parent=5 // pred_check_branch
        %175 = sbr.rel (%p172) target = $region28
      $region27: #{tpu_custom_call.1} parent=5 // pred_region
        %s176 = ssub.s32 %s14, 1
        %s177 = sand.u32 %s41, 1
        %s178 = scalar_lea.sflag [#allocation5], %s177
        %s179 = sand.u32 %s41, 1
        %s180 = smul.addr %s179, 8
        %s181 = scalar_lea.vmem [#allocation4], %s180
        // Predicated region
        $region29: #{tpu_custom_call.1} parent=27 // pred_check
          %p182 = pneg %p54
        $region30: #{tpu_custom_call.1} parent=27 // pred_check_branch
          %184 = sbr.rel (%p182) target = $region32
        $region31: #{tpu_custom_call.1} parent=27 // pred_region
          %186 = dma.done %s178, 128
        $region32: #{tpu_custom_call.1} parent=27 // pred_fallthru
          _
        %s187 = sand.u32 %s69, 1
        %s188 = scalar_lea.sflag [#allocation7], %s187
        %s189 = sand.u32 %s69, 1
        %s190 = smul.addr %s189, 2
        %s191 = scalar_lea.vmem [#allocation6], %s190
        // Predicated region
        $region33: #{tpu_custom_call.1} parent=27 // pred_check
          %p192 = pneg %p82
        $region34: #{tpu_custom_call.1} parent=27 // pred_check_branch
          %194 = sbr.rel (%p192) target = $region36
        $region35: #{tpu_custom_call.1} parent=27 // pred_region
          %196 = dma.done %s188, 32
        $region36: #{tpu_custom_call.1} parent=27 // pred_fallthru
          _
        %s197 = sand.u32 %s41, 1
        %s198 = scalar_lea.sflag [#allocation5], %s197
        %s199 = sand.u32 %s41, 1
        %s200 = smul.addr %s199, 8
        %s201 = scalar_lea.vmem [#allocation4], %s200
        %p202 = pneg %p54
        %p203 = pneg %p51
        %s204 = sand.u32 %s69, 1
        %s205 = scalar_lea.sflag [#allocation7], %s204
        %s206 = sand.u32 %s69, 1
        %s207 = smul.addr %s206, 2
        %s208 = scalar_lea.vmem [#allocation6], %s207
        %p209 = pneg %p82
        %p210 = pneg %p79
        %p211 = pneg %p108
        %p212 = pneg %p105
        %p213 = scmp.lt.s32.totalorder %s23, 1
        %s214 = scalar_select %p213, %s23, 1
        %s215 = scalar_lea.vmem %s2, %s214
        %s216 = smul.u32 2, %s24
        %s217 = smul.u32 2, %s24
        %p218 = scmp.lt.s32.totalorder %s23, 1
        %s219 = scalar_select %p218, %s23, 1
        %s220 = scalar_lea.vmem %s2, %s219
        %p221 = scmp.eq.s32.totalorder %s24, 0
        // Predicated region
        $region37: #{tpu_custom_call.1} parent=27 // pred_check
          %p222 = pneg %p221
        $region38: #{tpu_custom_call.1} parent=27 // pred_check_branch
          %224 = sbr.rel (%p222) target = $region40
        $region39: #{tpu_custom_call.1} parent=27 // pred_region
          %225 = vst [vmem:[#allocation2] sm:$0xff] 0.0
          %226 = vst [vmem:[#allocation3] sm:$0xff] 0.0
        $region40: #{tpu_custom_call.1} parent=27 // pred_fallthru
          _
        %v227 = vld [vmem:[%s181] sm:$0xff]
        %v228 = vld [vmem:[%s191] sm:$0x3]
        %s229 = smul.u32 %s24, 256
        %s230 = sadd.s32 %s229, 0
        %v231 = vlaneseq
        %v232 = vand.u32 %v231, 127
        %v233 = vadd.s32 %v232, 128
        %v234 = vstv %s230
        %v235 = vadd.s32 %v234, %v232
        %v236 = vadd.s32 %v234, %v233
        %vm237 = vcmp.lt.s32.totalorder %v235, 256
        %vm238 = vcmp.lt.s32.totalorder %v236, 256
        %vm239 = vcmp.ne.s32.totalorder %v228, 4294967295
        %v240 = vsel %vm237, 1, 0
        %v241 = vsel %vm238, 1, 0
        %v242 = vrot.slane %v241, 7
        %vm243 = vcmask 1040384
        %v244 = vsel %vm243, %v240, %v242
        %vm245 = vcmp.ne.s32.totalorder %v244, 0
        %vm246 = vmand %vm239, %vm245
        %v247 = vsel %vm246, 1, 0
        %v248 = vcvt.s32.f32 %v247
        %vm249 = vcmp.eq.s32.totalorder %v240, 1
        %vm250 = vcmp.eq.s32.totalorder %v241, 1
        %252 = vst [vmem:[#allocation1] ss:$2 sm:$0xff] %v227
        %v253 = vld.sshfl [vmem:[#allocation1] sm:$0xff pattern:$0x75316420]
        %v254 = vld.sshfl [vmem:[#allocation1 + $0x8] sm:$0xff pattern:$0x75316420]
        %v257 = vsel %vm249, %v253, 0.0
        %v258 = vsel %vm250, %v254, 0.0
        %vm259 = vcmp.gt.s32.totalorder %v228, 0
        %v260 = vsel %vm259, %v228, 0
        %vm261 = vcmask 1043456
        %v262 = vsel %vm261, %v257, -inf
        %v263 = vrot.slane %v262, 4
        %v264 = vmax.f32 %v262, %v263
        %v265 = vrot.slane %v264, 2
        %v266 = vmax.f32 %v264, %v265
        %v267 = vrot.slane %v266, 1
        %v268 = vmax.f32 %v266, %v267
        %v269 = vsel %vm261, %v258, -inf
        %v270 = vrot.slane %v269, 4
        %v271 = vmax.f32 %v269, %v270
        %v272 = vrot.slane %v271, 2
        %v273 = vmax.f32 %v271, %v272
        %v274 = vrot.slane %v273, 1
        %v275 = vmax.f32 %v273, %v274
        %v276 = vsub.f32 %v257, %v268
        %v277 = vsub.f32 %v258, %v275
        %v278 = vmul.f32 %v276, 1.442695
        %v279 = vpow.pop %v278
        %v280 = vmul.f32 %v277, 1.442695
        %v281 = vpow.pop %v280
        %v282 = vsel %vm261, %v279, 0.0
        %v283 = vrot.slane %v282, 4
        %v284 = vadd.f32 %v282, %v283
        %v285 = vrot.slane %v284, 2
        %v286 = vadd.f32 %v284, %v285
        %v287 = vrot.slane %v286, 1
        %v288 = vadd.f32 %v286, %v287
        %v289 = vsel %vm261, %v281, 0.0
        %v290 = vrot.slane %v289, 4
        %v291 = vadd.f32 %v289, %v290
        %v292 = vrot.slane %v291, 2
        %v293 = vadd.f32 %v291, %v292
        %v294 = vrot.slane %v293, 1
        %v295 = vadd.f32 %v293, %v294
        %v296 = vrcp.pop %v288
        %v297 = vmul.f32 %v288, %v296
        %v298 = vsub.f32 1.0, %v297
        %v299 = vmul.f32 %v296, %v298
        %v300 = vadd.f32 %v296, %v299
        %vm301 = vweird.f32 %v288
        %vm302 = vweird.f32 %v296
        %vm303 = vmor %vm301, %vm302
        %v304 = vsel %vm303, %v296, %v300
        %v305 = vand.u32 2147483647, %v288
        %vm306 = vcmp.eq.f32.partialorder %v305, 8.507059e+37
        %v307 = vand.u32 %v288, 2147483648
        %v308 = vor.u32 1.1754944e-38, %v307
        %v309 = vsel %vm306, %v308, %v304
        %v310 = vmul.f32 1.0, %v309
        %v311 = vrcp.pop %v295
        %v312 = vmul.f32 %v295, %v311
        %v313 = vsub.f32 1.0, %v312
        %v314 = vmul.f32 %v311, %v313
        %v315 = vadd.f32 %v311, %v314
        %vm316 = vweird.f32 %v295
        %vm317 = vweird.f32 %v311
        %vm318 = vmor %vm316, %vm317
        %v319 = vsel %vm318, %v311, %v315
        %v320 = vand.u32 2147483647, %v295
        %vm321 = vcmp.eq.f32.partialorder %v320, 8.507059e+37
        %v322 = vand.u32 %v295, 2147483648
        %v323 = vor.u32 1.1754944e-38, %v322
        %v324 = vsel %vm321, %v323, %v319
        %v325 = vmul.f32 1.0, %v324
        %v326 = vmul.f32 %v279, %v310
        %v327 = vmul.f32 %v281, %v325
        %v328 = vlaneseq
        %v329 = vshrl.u32 %v328, 7
        %v330 = vperm.slane %v260, 0
        %v331 = vperm.slane %v260, 1
        %vm332 = vcmp.eq.s32.totalorder %v329, %v330
        %vm333 = vcmp.eq.s32.totalorder %v329, %v331
        %v335 = vperm.slane %v248, 0
        %v336 = vperm.slane %v248, 1
        %v339 = vsel %vm332, %v335, 0.0
        %v340 = vsel %vm333, %v336, 0.0
        %v341 = vld [vmem:[#allocation2] sm:$0xff]
        %v342 = vmul.f32 %v326, %v339
        %v343 = vmul.f32 %v327, %v340
        %v346 = vrot.slane %v343, 4
        %v347 = vsel %vm261, %v342, %v346
        %v349 = vadd.f32 %v341, %v347
        %350 = vst [vmem:[#allocation2] sm:$0xff] %v349
        %v351 = vld [vmem:[#allocation3] sm:$0xff]
        %v352 = vmul.f32 %v326, %v335
        %v353 = vmul.f32 %v327, %v336
        %v354 = vmul.f32 %v326, %v352
        %v355 = vmul.f32 %v327, %v353
        %v356 = vadd.f32 %v354, %v339
        %v357 = vadd.f32 %v355, %v340
        %v360 = vrot.slane %v357, 4
        %v361 = vsel %vm261, %v356, %v360
        %v363 = vadd.f32 %v351, %v361
        %364 = vst [vmem:[#allocation3] sm:$0xff] %v363
        // Predicated region
        $region41: #{tpu_custom_call.1} parent=27 // pred_check
          %p365 = pneg %p221
        $region42: #{tpu_custom_call.1} parent=27 // pred_check_branch
          %367 = sbr.rel (%p365) target = $region44
        $region43: #{tpu_custom_call.1} parent=27 // pred_region
          %v368 = vld [vmem:[#allocation2] sm:$0xff]
          %370 = vst [vmem:[#allocation1] ss:$2 sm:$0xff] %v368
          %v371 = vld.sshfl [vmem:[#allocation1] sm:$0xff pattern:$0x75316420]
          %v372 = vld.sshfl [vmem:[#allocation1 + $0x8] sm:$0xff pattern:$0x75316420]
          %v375 = vsel %vm261, %v371, 0.0
          %v376 = vsel %vm261, %v372, 0.0
          %v377 = vadd.f32 %v375, %v376
          %378 = vadd.xlane.f32.xlu0 %v377
          %v379 = vpop.xlane.xlu0 %378
          %v380 = vmul.f32 %v379, 2.0
          %v381 = vadd.f32 %v380, 1.0
          %v382 = vld [vmem:[#allocation3] sm:$0xff]
          %384 = vst [vmem:[#allocation1] ss:$2 sm:$0xff] %v382
          %v385 = vld.sshfl [vmem:[#allocation1] sm:$0xff pattern:$0x75316420]
          %v386 = vld.sshfl [vmem:[#allocation1 + $0x8] sm:$0xff pattern:$0x75316420]
          %v389 = vsel %vm261, %v385, 0.0
          %v390 = vsel %vm261, %v386, 0.0
          %v391 = vadd.f32 %v389, %v390
          %392 = vadd.xlane.f32.xlu0 %v391
          %v393 = vpop.xlane.xlu0 %392
          %v394 = vadd.f32 %v393, 1.0
          %v395 = vrcp.pop %v394
          %v396 = vmul.f32 %v394, %v395
          %v397 = vsub.f32 1.0, %v396
          %v398 = vmul.f32 %v395, %v397
          %v399 = vadd.f32 %v395, %v398
          %vm400 = vweird.f32 %v394
          %vm401 = vweird.f32 %v395
          %vm402 = vmor %vm400, %vm401
          %v403 = vsel %vm402, %v395, %v399
          %v404 = vand.u32 2147483647, %v394
          %vm405 = vcmp.eq.f32.partialorder %v404, 8.507059e+37
          %v406 = vand.u32 %v394, 2147483648
          %v407 = vor.u32 1.1754944e-38, %v406
          %v408 = vsel %vm405, %v407, %v403
          %v409 = vmul.f32 %v381, %v408
          %v410 = vsub.f32 1.0, %v409
          %v411 = vsel %vm261, %v410, 0.0
          %v412 = vrot.slane %v411, 4
          %v413 = vadd.f32 %v411, %v412
          %v414 = vrot.slane %v413, 2
          %v415 = vadd.f32 %v413, %v414
          %v416 = vrot.slane %v415, 1
          %v417 = vadd.f32 %v415, %v416
          %vm418 = vcmask 0
          %419 = vst.msk [vmem:[%s220] sm:$0x1] %vm418, %v417
        $region44: #{tpu_custom_call.1} parent=27 // pred_fallthru
          _
        %p420 = scmp.lt.s32.totalorder %s23, 1
        %s421 = scalar_select %p420, %s23, 1
        %s422 = scalar_lea.vmem %s2, %s421
        // Predicated region
        $region45: #{tpu_custom_call.1} parent=27 // pred_check
          %p423 = pneg %p105
        $region46: #{tpu_custom_call.1} parent=27 // pred_check_branch
          %425 = sbr.rel (%p423) target = $region48
        $region47: #{tpu_custom_call.1} parent=27 // pred_region
          _
        $region48: #{tpu_custom_call.1} parent=27 // pred_fallthru
          _
      $region28: #{tpu_custom_call.1} parent=5 // pred_fallthru
        _
      %p426 = scmp.le.s32.totalorder 2, %s14
      // Predicated region
      $region49: #{tpu_custom_call.1} parent=5 // pred_check
        %p427 = pneg %p426
      $region50: #{tpu_custom_call.1} parent=5 // pred_check_branch
        %429 = sbr.rel (%p427) target = $region52
      $region51: #{tpu_custom_call.1} parent=5 // pred_region
        %s430 = ssub.s32 %s14, 2
        // Predicated region
        $region53: #{tpu_custom_call.1} parent=51 // pred_check
          %p431 = pneg %p111
        $region54: #{tpu_custom_call.1} parent=51 // pred_check_branch
          %433 = sbr.rel (%p431) target = $region56
        $region55: #{tpu_custom_call.1} parent=51 // pred_region
          %p434 = scmp.lt.s32.totalorder %s25, 1
          %s435 = scalar_select %p434, %s25, 1
          %s436 = scalar_lea.vmem %s2, %s435
        $region56: #{tpu_custom_call.1} parent=51 // pred_fallthru
          _
      $region52: #{tpu_custom_call.1} parent=5 // pred_fallthru
        _
    $region6: #{tpu_custom_call.1} parent=1 // loop_footer
      %s18 = sadd.s32 1, %s14
    $region7: #{tpu_custom_call.1} parent=1 // loop_footer_branch
      %13 = sbr.rel target = $region3
    $region8: #{tpu_custom_call.1} parent=1 // loop_exit
      _
    %437 = vsyncpa [#allocation5], 1
    %s438 = scalar_lea.sflag [#allocation5], 1
    %439 = vsyncpa %s438, 1
    %440 = vsyncpa [#allocation7], 1
    %s441 = scalar_lea.sflag [#allocation7], 1
    %442 = vsyncpa %s441, 1

</llo_original>
